<compile_context>
chip_gen: v7x
topology: tpu7x:2x2x1
jax: 0.10.0
libtpu: 0.0.40
codegen_flags: <defaults>
</compile_context>

<pallas_src>
import jax
import jax.numpy as jnp
from jax.experimental import pallas as pl
from jax.experimental.pallas import tpu as pltpu


# ---------------------------------------------------------------------------
# helpers
# ---------------------------------------------------------------------------
def _round_up(x, m):
    return ((x + m - 1) // m) * m


def _make_cutoffs(n_classes):
    if n_classes <= 10:
        cutoffs = [max(1, n_classes // 2)]
    elif n_classes <= 1000:
        cutoffs = [max(1, n_classes // 2)]
    elif n_classes <= 10000:
        cutoffs = [1000, max(1001, min(5000, n_classes - 2))]
    else:
        cutoffs = [1000, 10000, min(20000, n_classes - 2)]
    return cutoffs + [n_classes]  # PyTorch appends n_classes internally


# ---------------------------------------------------------------------------
# config / parameter construction (mirrors AdaptiveSoftmaxProbe.__init__)
# ---------------------------------------------------------------------------
def init_params(key, input_dim, n_classes, div_value=4.0):
    cutoffs = _make_cutoffs(n_classes)
    shortlist = cutoffs[0]
    n_clusters = len(cutoffs) - 1
    head_size = shortlist + n_clusters

    keys = jax.random.split(key, 1 + 2 * n_clusters)
    # nn.Linear(in_features, head_size, bias=False) weight: (head_size, in_features)
    head_w = 0.05 * jax.random.normal(keys[0], (head_size, input_dim), jnp.float32)

    tail = []
    for i in range(n_clusters):
        hsz = int(input_dim // (div_value ** (i + 1)))
        osz = cutoffs[i + 1] - cutoffs[i]
        w1 = 0.05 * jax.random.normal(keys[1 + 2 * i], (hsz, input_dim), jnp.float32)
        w2 = 0.05 * jax.random.normal(keys[2 + 2 * i], (osz, hsz), jnp.float32)
        tail.append((w1, w2))

    # --- kernel-ready weights: one-time transpose to (in, out), bf16, hsz padded ---
    head_w_t = head_w.T.astype(jnp.bfloat16)                       # (D, head_size)
    tail_t = []
    for (w1, w2) in tail:
        hsz, osz = w1.shape[0], w2.shape[0]
        hsz_p = _round_up(max(hsz, 1), 128)                        # full-sublane K dim
        w1t = jnp.zeros((input_dim, hsz_p), jnp.bfloat16)
        w1t = w1t.at[:, :hsz].set(w1.T.astype(jnp.bfloat16))       # (D, hsz_p)
        w2t = jnp.zeros((hsz_p, osz), jnp.bfloat16)
        w2t = w2t.at[:hsz, :].set(w2.T.astype(jnp.bfloat16))       # (hsz_p, osz)
        tail_t.append((w1t, w2t))

    return {
        "cutoffs": cutoffs,
        "shortlist": shortlist,
        "n_clusters": n_clusters,
        "n_classes": n_classes,
        # f32 PyTorch-layout copies (reference / checkpoint parity)
        "head_w": head_w,          # (head_size, D)
        "tail": tail,              # [((hsz, D), (osz, hsz)), ...]
        # kernel-ready bf16 pre-transposed copies
        "head_w_t": head_w_t,      # (D, head_size)
        "tail_t": tail_t,          # [((D, hsz_p), (hsz_p, osz)), ...]
    }


# ---------------------------------------------------------------------------
# Pallas kernel
# ---------------------------------------------------------------------------
def _log_softmax(x):
    m = jnp.max(x, axis=-1, keepdims=True)
    s = jnp.sum(jnp.exp(x - m), axis=-1, keepdims=True)
    return x - (m + jnp.log(s))


def _make_kernel(shortlist, cutoffs, n_clusters, n_pad):
    n_classes = cutoffs[-1]

    def kernel(*refs):
        x_ref = refs[0]
        head_w_ref = refs[1]                       # (D, head_size)   bf16, resident
        tail_refs = refs[2:2 + 2 * n_clusters]     # (D, hsz_p), (hsz_p, osz) per cluster
        out_ref = refs[2 + 2 * n_clusters]         # (TB, n_pad)      f32

        x = x_ref[...]                                               # (TB, D) bf16
        head_logits = jnp.dot(x, head_w_ref[...],
                              preferred_element_type=jnp.float32)    # (TB, head_size) f32
        head_logprob = _log_softmax(head_logits)

        # shortlist classes come straight from the head — stream out immediately.
        out_ref[:, 0:shortlist] = head_logprob[:, 0:shortlist]

        # gate columns hoisted once per batch tile
        gates = head_logprob[:, shortlist:shortlist + n_clusters]    # (TB, n_clusters)

        for i in range(n_clusters):
            w1 = tail_refs[2 * i][...]                               # (D, hsz_p)
            w2 = tail_refs[2 * i + 1][...]                           # (hsz_p, osz)
            h = jnp.dot(x, w1, preferred_element_type=jnp.float32)   # (TB, hsz_p)
            logits = jnp.dot(h.astype(jnp.bfloat16), w2,
                             preferred_element_type=jnp.float32)     # (TB, osz)
            clogp = _log_softmax(logits)
            lo, hi = cutoffs[i], cutoffs[i + 1]                      # static Python ints
            out_ref[:, lo:hi] = clogp + gates[:, i:i + 1]

        # fill lane-padding columns so the output block is fully defined
        if n_pad > n_classes:
            out_ref[:, n_classes:n_pad] = jnp.full(
                (x.shape[0], n_pad - n_classes), -jnp.inf, dtype=jnp.float32)

    return kernel


def adaptive_log_prob(x, params):
    """Full log-probabilities over all n_classes (== module.log_prob(x))."""
    B, D = x.shape
    shortlist = params["shortlist"]
    cutoffs = params["cutoffs"]
    n_clusters = params["n_clusters"]
    n_classes = params["n_classes"]
    head_w_t = params["head_w_t"]
    tail_t = params["tail_t"]

    n_pad = _round_up(n_classes, 128)

    # resident weight set (bf16 bytes)
    w_bytes = head_w_t.size * 2 + sum(w1.size * 2 + w2.size * 2 for w1, w2 in tail_t)

    # pick a batch tile: weights + 2x-buffered x(bf16)/out(f32) tiles under ~48 MiB
    budget = 48 * 1024 * 1024
    per_row = 2 * (D * 2) + 2 * (n_pad * 4)
    tb = (budget - w_bytes) // per_row if budget > w_bytes else 8
    tb = int(max(8, min(256, tb)))
    tb = max(8, (tb // 8) * 8)
    tb = min(tb, _round_up(B, 8))

    B_pad = _round_up(B, tb)
    x_p = jnp.zeros((B_pad, D), jnp.bfloat16).at[:B, :].set(x.astype(jnp.bfloat16))

    inputs = [x_p, head_w_t]
    in_specs = [
        pl.BlockSpec((tb, D), lambda i: (i, 0)),                 # batch-tiled input
        pl.BlockSpec(head_w_t.shape, lambda i: (0, 0)),          # resident weights
    ]
    for (w1t, w2t) in tail_t:
        inputs += [w1t, w2t]
        in_specs += [
            pl.BlockSpec(w1t.shape, lambda i: (0, 0)),
            pl.BlockSpec(w2t.shape, lambda i: (0, 0)),
        ]

    kernel = _make_kernel(shortlist, cutoffs, n_clusters, n_pad)

    flops = 2 * B_pad * (D * head_w_t.shape[1]
                         + sum(D * w1t.shape[1] + w1t.shape[1] * w2t.shape[1]
                               for w1t, w2t in tail_t))
    transcendentals = B_pad * (head_w_t.shape[1]
                               + sum(w2t.shape[1] for _, w2t in tail_t))
    bytes_accessed = x_p.size * 2 + w_bytes + B_pad * n_pad * 4

    vmem_need = w_bytes + tb * per_row + 4 * 1024 * 1024
    vmem_limit = int(min(64 * 1024 * 1024, max(32 * 1024 * 1024, vmem_need)))

    out = pl.pallas_call(
        kernel,
        out_shape=jax.ShapeDtypeStruct((B_pad, n_pad), jnp.float32),
        grid=(B_pad // tb,),
        in_specs=in_specs,
        out_specs=pl.BlockSpec((tb, n_pad), lambda i: (i, 0)),
        compiler_params=pltpu.CompilerParams(
            dimension_semantics=("parallel",),
            vmem_limit_bytes=vmem_limit),
        cost_estimate=pl.CostEstimate(
            flops=int(flops),
            transcendentals=int(transcendentals),
            bytes_accessed=int(bytes_accessed)),
    )(*inputs)
    return out[:B, :n_classes]


def adaptive_softmax_probe_forward(x, params, target=None):
    """Mirrors AdaptiveSoftmaxProbe.forward."""
    logp = adaptive_log_prob(x, params)
    if target is None:
        return logp
    # AdaptiveLogSoftmaxWithLoss(x, target) -> (output, loss) where
    # output[b] = log p(target[b] | x[b]) and loss = -mean(output).
    # TODO(synk): data-dependent single-cluster loss path (scalar-prefetch the per-row
    # cluster id) to avoid materializing the full (B, n_classes) log-prob matrix.
    out = jnp.take_along_axis(logp, target[:, None], axis=1)[:, 0]
    loss = -jnp.mean(out)
    return out, loss


# ---------------------------------------------------------------------------
# pure-JAX reference (f32 weights) for a sanity check
# ---------------------------------------------------------------------------
def _ref_log_prob(x, params):
    shortlist = params["shortlist"]
    head_logprob = jax.nn.log_softmax(x @ params["head_w"].T, axis=-1)
    pieces = [head_logprob[:, :shortlist]]
    for i, (w1, w2) in enumerate(params["tail"]):
        clogp = jax.nn.log_softmax((x @ w1.T) @ w2.T, axis=-1)
        pieces.append(clogp + head_logprob[:, shortlist + i:shortlist + i + 1])
    return jnp.concatenate(pieces, axis=-1)


if __name__ == "__main__":
    key = jax.random.PRNGKey(0)
    k_param, k_x, k_t = jax.random.split(key, 3)

    batch, input_dim, n_classes = 8, 32, 10
    params = init_params(k_param, input_dim, n_classes)

    x = jax.random.normal(k_x, (batch, input_dim), jnp.float32)
    target = jax.random.randint(k_t, (batch,), 0, n_classes)

    # target=None path: full log-probs via the Pallas kernel
    logp = adaptive_softmax_probe_forward(x, params, target=None)
    logp = jax.block_until_ready(logp)

    # target path (glue on top of the same kernel output)
    out, loss = adaptive_softmax_probe_forward(x, params, target=target)
    jax.block_until_ready(loss)

    # correctness checks
    ref = _ref_log_prob(x, params)
    assert logp.shape == (batch, n_classes)
    # bf16 weights/activations on the MXU => looser tolerance vs the f32 reference
    assert jnp.allclose(logp, ref, atol=3e-2, rtol=3e-2)
    # log-probs should still normalize to ~1 (log_softmax is exact in f32)
    assert jnp.allclose(jnp.sum(jnp.exp(logp), axis=-1), 1.0, atol=1e-4)
    assert out.shape == (batch,)
    assert bool(jnp.isfinite(loss))

    print("KERNEL_OK")
</pallas_src>

<mosaic_0001>
module attributes {stable_mosaic.version = 11 : i64} {
  func.func @kernel(%arg0: i32, %arg1: memref<8x32xbf16, #tpu.memory_space<vmem>>, %arg2: memref<32x6xbf16, #tpu.memory_space<vmem>>, %arg3: memref<32x128xbf16, #tpu.memory_space<vmem>>, %arg4: memref<128x5xbf16, #tpu.memory_space<vmem>>, %arg5: memref<8x128xf32, #tpu.memory_space<vmem>>) attributes {dimension_semantics = [#tpu.dimension_semantics<parallel>], iteration_bounds = array<i64: 1>, scalar_prefetch = 0 : i64, scratch_operands = 0 : i64, tpu.core_type = #tpu.core_type<tc>, window_params = [{transform_indices = @transform_0, window_bounds = array<i64: 8, 32>}, {pipeline_mode = #tpu.pipeline_mode<synchronous>, transform_indices = @transform_1, window_bounds = array<i64: 32, 6>}, {pipeline_mode = #tpu.pipeline_mode<synchronous>, transform_indices = @transform_2, window_bounds = array<i64: 32, 128>}, {pipeline_mode = #tpu.pipeline_mode<synchronous>, transform_indices = @transform_3, window_bounds = array<i64: 128, 5>}, {transform_indices = @transform_4, window_bounds = array<i64: 8, 128>}]} {
    %c0 = arith.constant 0 : index
    %c0_0 = arith.constant 0 : index
    %0 = vector.load %arg1[%c0, %c0_0] : memref<8x32xbf16, #tpu.memory_space<vmem>>, vector<8x32xbf16>
    %c0_1 = arith.constant 0 : index
    %c0_2 = arith.constant 0 : index
    %1 = vector.load %arg2[%c0_1, %c0_2] : memref<32x6xbf16, #tpu.memory_space<vmem>>, vector<32x6xbf16>
    %cst = arith.constant dense<0.000000e+00> : vector<8x6xf32>
    %2 = tpu.matmul %0, %1, %cst {dimension_numbers = #tpu.dot_dimension_numbers<[1], [0], [0], [1], [0, 0, 1, 1], [], []>} : vector<8x32xbf16>, vector<32x6xbf16>, vector<8x6xf32> -> vector<8x6xf32>
    %cst_3 = arith.constant dense<0xFF800000> : vector<8xf32>
    %3 = vector.multi_reduction <maximumf>, %2, %cst_3 [1] : vector<8x6xf32> to vector<8xf32>
    %4 = vector.shape_cast %3 : vector<8xf32> to vector<8x1xf32>
    %5 = vector.broadcast %4 : vector<8x1xf32> to vector<8x6xf32>
    %6 = arith.subf %2, %5 : vector<8x6xf32>
    %7 = math.exp %6 : vector<8x6xf32>
    %cst_4 = arith.constant dense<0.000000e+00> : vector<8xf32>
    %8 = vector.multi_reduction <add>, %7, %cst_4 [1] : vector<8x6xf32> to vector<8xf32>
    %9 = vector.shape_cast %8 : vector<8xf32> to vector<8x1xf32>
    %10 = math.log %9 : vector<8x1xf32>
    %11 = arith.addf %4, %10 : vector<8x1xf32>
    %12 = vector.broadcast %11 : vector<8x1xf32> to vector<8x6xf32>
    %13 = arith.subf %2, %12 : vector<8x6xf32>
    %14 = vector.extract_strided_slice %13 {offsets = [0, 0], sizes = [8, 5], strides = [1, 1]} : vector<8x6xf32> to vector<8x5xf32>
    %c0_5 = arith.constant 0 : index
    %c0_6 = arith.constant 0 : index
    %15 = vector.load %arg5[%c0_5, %c0_6] : memref<8x128xf32, #tpu.memory_space<vmem>>, vector<8x5xf32>
    tpu.vector_store %arg5[%c0_5, %c0_6], %14 {strides = array<i32>} : memref<8x128xf32, #tpu.memory_space<vmem>>, vector<8x5xf32>,
    %16 = vector.extract_strided_slice %13 {offsets = [0, 5], sizes = [8, 1], strides = [1, 1]} : vector<8x6xf32> to vector<8x1xf32>
    %c0_7 = arith.constant 0 : index
    %c0_8 = arith.constant 0 : index
    %17 = vector.load %arg3[%c0_7, %c0_8] : memref<32x128xbf16, #tpu.memory_space<vmem>>, vector<32x128xbf16>
    %c0_9 = arith.constant 0 : index
    %c0_10 = arith.constant 0 : index
    %18 = vector.load %arg4[%c0_9, %c0_10] : memref<128x5xbf16, #tpu.memory_space<vmem>>, vector<128x5xbf16>
    %cst_11 = arith.constant dense<0.000000e+00> : vector<8x128xf32>
    %19 = tpu.matmul %0, %17, %cst_11 {dimension_numbers = #tpu.dot_dimension_numbers<[1], [0], [0], [1], [0, 0, 1, 1], [], []>} : vector<8x32xbf16>, vector<32x128xbf16>, vector<8x128xf32> -> vector<8x128xf32>
    %20 = arith.truncf %19 : vector<8x128xf32> to vector<8x128xbf16>
    %cst_12 = arith.constant dense<0.000000e+00> : vector<8x5xf32>
    %21 = tpu.matmul %20, %18, %cst_12 {dimension_numbers = #tpu.dot_dimension_numbers<[1], [0], [0], [1], [0, 0, 1, 1], [], []>} : vector<8x128xbf16>, vector<128x5xbf16>, vector<8x5xf32> -> vector<8x5xf32>
    %cst_13 = arith.constant dense<0xFF800000> : vector<8xf32>
    %22 = vector.multi_reduction <maximumf>, %21, %cst_13 [1] : vector<8x5xf32> to vector<8xf32>
    %23 = vector.shape_cast %22 : vector<8xf32> to vector<8x1xf32>
    %24 = vector.broadcast %23 : vector<8x1xf32> to vector<8x5xf32>
    %25 = arith.subf %21, %24 : vector<8x5xf32>
    %26 = math.exp %25 : vector<8x5xf32>
    %cst_14 = arith.constant dense<0.000000e+00> : vector<8xf32>
    %27 = vector.multi_reduction <add>, %26, %cst_14 [1] : vector<8x5xf32> to vector<8xf32>
    %28 = vector.shape_cast %27 : vector<8xf32> to vector<8x1xf32>
    %29 = math.log %28 : vector<8x1xf32>
    %30 = arith.addf %23, %29 : vector<8x1xf32>
    %31 = vector.broadcast %30 : vector<8x1xf32> to vector<8x5xf32>
    %32 = arith.subf %21, %31 : vector<8x5xf32>
    %33 = vector.broadcast %16 : vector<8x1xf32> to vector<8x5xf32>
    %34 = arith.addf %32, %33 : vector<8x5xf32>
    %c0_15 = arith.constant 0 : index
    %c5 = arith.constant 5 : index
    %35 = vector.load %arg5[%c0_15, %c5] : memref<8x128xf32, #tpu.memory_space<vmem>>, vector<8x5xf32>
    tpu.vector_store %arg5[%c0_15, %c5], %34 {strides = array<i32>} : memref<8x128xf32, #tpu.memory_space<vmem>>, vector<8x5xf32>,
    %cst_16 = arith.constant 0xFF800000 : f32
    %36 = vector.broadcast %cst_16 : f32 to vector<8x118xf32>
    %c0_17 = arith.constant 0 : index
    %c10 = arith.constant 10 : index
    %37 = vector.load %arg5[%c0_17, %c10] : memref<8x128xf32, #tpu.memory_space<vmem>>, vector<8x118xf32>
    tpu.vector_store %arg5[%c0_17, %c10], %36 {strides = array<i32>} : memref<8x128xf32, #tpu.memory_space<vmem>>, vector<8x118xf32>,
    return
  }
  func.func @transform_0(%arg0: i32) -> (i32, i32) {
    %c0_i32 = arith.constant 0 : i32
    %c0_i32_0 = arith.constant 0 : i32
    return %arg0, %c0_i32 : i32, i32
  }
  func.func @transform_1(%arg0: i32) -> (i32, i32) {
    %c0_i32 = arith.constant 0 : i32
    %c0_i32_0 = arith.constant 0 : i32
    %c0_i32_1 = arith.constant 0 : i32
    return %c0_i32, %c0_i32_0 : i32, i32
  }
  func.func @transform_2(%arg0: i32) -> (i32, i32) {
    %c0_i32 = arith.constant 0 : i32
    %c0_i32_0 = arith.constant 0 : i32
    %c0_i32_1 = arith.constant 0 : i32
    return %c0_i32, %c0_i32_0 : i32, i32
  }
  func.func @transform_3(%arg0: i32) -> (i32, i32) {
    %c0_i32 = arith.constant 0 : i32
    %c0_i32_0 = arith.constant 0 : i32
    %c0_i32_1 = arith.constant 0 : i32
    return %c0_i32, %c0_i32_0 : i32, i32
  }
  func.func @transform_4(%arg0: i32) -> (i32, i32) {
    %c0_i32 = arith.constant 0 : i32
    %c0_i32_0 = arith.constant 0 : i32
    return %arg0, %c0_i32 : i32, i32
  }
}

</mosaic_0001>

<llo_original>
// kernel: tpu_custom_call.1
$region0: #{tpu_custom_call.1}
  #allocation0 [shape = 'u32[]', space=smem, size = 0x4, offset = 0x4, fixed_abs, tag = 'smem constant byte address 0x4 - core index']
  #allocation1 [shape = 'u32[144,128]{1,0:T(1,128)}', space=vmem, size = 0x12000, scoped, tag = 'internal scratch']
  %s0 = inlined_call_operand.vmem [shape: bf16[8,32], index: 0, kind: input, shape index: {}]
  %s1 = inlined_call_operand.vmem [shape: bf16[32,6], index: 1, kind: input, shape index: {}]
  %s2 = inlined_call_operand.vmem [shape: bf16[32,128], index: 2, kind: input, shape index: {}]
  %s3 = inlined_call_operand.vmem [shape: bf16[128,5], index: 3, kind: input, shape index: {}]
  %s4 = inlined_call_operand.hbm [shape: f32[8,128], index: 4, kind: output, shape index: {}]
  %s5 = sld [smem:[#allocation0]]
  $region26: #{tpu_custom_call.1} parent=0
    _
  %s7 = ssub.s32 1, %s5
  %s8 = scalar_select 0, %s7, %s5
  $region1: #{tpu_custom_call.1} parent=0
    #allocation2 [shape = 'u8[4096]{0}', space=vmem, size = 0x1000, scoped, tag = 'output window, operand 0, single buffered']
    #allocation3 [shape = 's32[1]{0}', space=sflag, size = 0x4, scoped, tag = 'scoped memory for tpu_custom_call.1']
    %9 = vsyncpa [#allocation3], 0
    // Predicated region
    $region2: #{tpu_custom_call.1} parent=1 // pred_check
      _
    $region3: #{tpu_custom_call.1} parent=1 // pred_check_branch
      %11 = sbr.rel (0) target = $region5
    $region4: #{tpu_custom_call.1} parent=1 // pred_region
      _
    $region5: #{tpu_custom_call.1} parent=1 // pred_fallthru
      _
    // Predicated region
    $region6: #{tpu_custom_call.1} parent=1 // pred_check
      _
    $region7: #{tpu_custom_call.1} parent=1 // pred_check_branch
      %13 = sbr.rel (0) target = $region9
    $region8: #{tpu_custom_call.1} parent=1 // pred_region
      _
    $region9: #{tpu_custom_call.1} parent=1 // pred_fallthru
      _
    // Predicated region
    $region10: #{tpu_custom_call.1} parent=1 // pred_check
      _
    $region11: #{tpu_custom_call.1} parent=1 // pred_check_branch
      %15 = sbr.rel (0) target = $region13
    $region12: #{tpu_custom_call.1} parent=1 // pred_region
      _
    $region13: #{tpu_custom_call.1} parent=1 // pred_fallthru
      _
    // Predicated region
    $region14: #{tpu_custom_call.1} parent=1 // pred_check
      _
    $region15: #{tpu_custom_call.1} parent=1 // pred_check_branch
      %17 = sbr.rel (0) target = $region17
    $region16: #{tpu_custom_call.1} parent=1 // pred_region
      _
    $region17: #{tpu_custom_call.1} parent=1 // pred_fallthru
      _
    %v19 = vld [vmem:[%s0] sm:$0xf]
    %v20 = vld [vmem:[%s1] sm:$0xf]
    %v21 = vld [vmem:[%s1 + $0x4] sm:$0xf]
    %v22 = vld [vmem:[%s1 + $0x8] sm:$0xf]
    %v23 = vld [vmem:[%s1 + $0xc] sm:$0xf]
    %v28 = vunpack.c.l.b16 %v20
    %v29 = vunpack.c.l.b16 %v21
    %v30 = vunpack.c.l.b16 %v22
    %v31 = vunpack.c.l.b16 %v23
    %v32 = vpack.c.b16 %v29, %v28
    %v33 = vpack.c.b16 %v31, %v30
    %vm36 = vcmask 261120
    %v38 = vsel %vm36, %v19, 0
    %40 = vmatprep.subr.bf16.mxu0 0
    %41 = vmatpush1.bf16.msra.mxu0 %v32
    %42 = vmatprep.subr.bf16.mxu0 0
    %43 = vmatpush1.bf16.msra.mxu0 %v33
    %44 = vmatprep.subr.bf16.mxu0 0
    %45 = vmatpush1.bf16.msra.mxu0 0
    %46 = vmatprep.subr.bf16.mxu0 0
    %47 = vmatpush1.bf16.msra.mxu0 0
    %48 = vmatprep.subr.bf16.mxu0 0
    %49 = vmatpush1.bf16.msra.mxu0 0
    %50 = vmatprep.subr.bf16.mxu0 0
    %51 = vmatpush1.bf16.msra.mxu0 0
    %52 = vmatprep.subr.bf16.mxu0 0
    %53 = vmatpush1.bf16.msra.mxu0 0
    %54 = vmatprep.subr.bf16.mxu0 0
    %55 = vmatpush1.bf16.msra.mxu0 0
    %56 = vmatprep.subr.bf16.mxu0 0
    %57 = vmatpush1.bf16.msra.mxu0 0
    %58 = vmatprep.subr.bf16.mxu0 0
    %59 = vmatpush1.bf16.msra.mxu0 0
    %60 = vmatprep.subr.bf16.mxu0 0
    %61 = vmatpush1.bf16.msra.mxu0 0
    %62 = vmatprep.subr.bf16.mxu0 0
    %63 = vmatpush1.bf16.msra.mxu0 0
    %64 = vmatprep.subr.bf16.mxu0 0
    %65 = vmatpush1.bf16.msra.mxu0 0
    %66 = vmatprep.subr.bf16.mxu0 0
    %67 = vmatpush1.bf16.msra.mxu0 0
    %68 = vmatprep.subr.bf16.mxu0 0
    %69 = vmatpush1.bf16.msra.mxu0 0
    %70 = vmatprep.subr.bf16.mxu0 0
    %71 = vmatpush1.bf16.msra.mxu0 0
    %72 = vmatprep.mubr.bf16.mxu0 0
    %73 = vmatmul.mubr.bf16.gmra.mrb[0].mxu0 %v38
    %v74 = vpop.f32.mrb[0].mxu0
    %v75 = vadd.f32 0.0, %v74
    %v76 = vpop.f32.mrb[0].mxu0
    %v77 = vpop.f32.mrb[0].mxu0
    %v78 = vpop.f32.mrb[0].mxu0
    %79 = vdwg.mxu0
    %vm80 = vcmask 48128
    %v81 = vsel %vm80, %v75, -inf
    %82 = vmax.xlane.f32.xlu0 %v81
    %v83 = vpop.xlane.xlu0 %82
    %v84 = vsub.f32 %v75, %v83
    %v85 = vmul.f32 %v84, 1.442695
    %v86 = vpow.pop %v85
    %v87 = vsel %vm80, %v86, 0.0
    %88 = vadd.xlane.f32.xlu0 %v87
    %v89 = vpop.xlane.xlu0 %88
    %v90 = vlog2.pop %v89
    %v91 = vmul.f32 %v90, 0.6931472
    %v92 = vadd.f32 %v83, %v91
    %v93 = vsub.f32 %v75, %v92
    %vm94 = vcmask 39936
    %95 = vst.msk [vmem:[#allocation2] sm:$0xff] %vm94, %v93
    %v96 = vld [vmem:[%s2] sm:$0xf]
    %v97 = vld [vmem:[%s2 + $0x4] sm:$0xf]
    %v98 = vld [vmem:[%s2 + $0x8] sm:$0xf]
    %v99 = vld [vmem:[%s2 + $0xc] sm:$0xf]
    %v100 = vld [vmem:[%s3] sm:$0xf]
    %v101 = vld [vmem:[%s3 + $0x4] sm:$0xf]
    %v102 = vld [vmem:[%s3 + $0x8] sm:$0xf]
    %v103 = vld [vmem:[%s3 + $0xc] sm:$0xf]
    %v104 = vld [vmem:[%s3 + $0x10] sm:$0xf]
    %v105 = vld [vmem:[%s3 + $0x14] sm:$0xf]
    %v106 = vld [vmem:[%s3 + $0x18] sm:$0xf]
    %v107 = vld [vmem:[%s3 + $0x1c] sm:$0xf]
    %v108 = vld [vmem:[%s3 + $0x20] sm:$0xf]
    %v109 = vld [vmem:[%s3 + $0x24] sm:$0xf]
    %v110 = vld [vmem:[%s3 + $0x28] sm:$0xf]
    %v111 = vld [vmem:[%s3 + $0x2c] sm:$0xf]
    %v112 = vld [vmem:[%s3 + $0x30] sm:$0xf]
    %v113 = vld [vmem:[%s3 + $0x34] sm:$0xf]
    %v114 = vld [vmem:[%s3 + $0x38] sm:$0xf]
    %v115 = vld [vmem:[%s3 + $0x3c] sm:$0xf]
    %v120 = vunpack.c.l.b16 %v96
    %v121 = vunpack.c.l.b16 %v97
    %v122 = vunpack.c.l.b16 %v98
    %v123 = vunpack.c.l.b16 %v99
    %v124 = vpack.c.b16 %v121, %v120
    %v125 = vpack.c.b16 %v123, %v122
    %128 = vmatprep.subr.bf16.mxu0 0
    %129 = vmatpush1.bf16.msra.mxu0 %v124
    %130 = vmatprep.subr.bf16.mxu0 0
    %131 = vmatpush1.bf16.msra.mxu0 %v125
    %132 = vmatprep.subr.bf16.mxu0 0
    %133 = vmatpush1.bf16.msra.mxu0 0
    %134 = vmatprep.subr.bf16.mxu0 0
    %135 = vmatpush1.bf16.msra.mxu0 0
    %136 = vmatprep.subr.bf16.mxu0 0
    %137 = vmatpush1.bf16.msra.mxu0 0
    %138 = vmatprep.subr.bf16.mxu0 0
    %139 = vmatpush1.bf16.msra.mxu0 0
    %140 = vmatprep.subr.bf16.mxu0 0
    %141 = vmatpush1.bf16.msra.mxu0 0
    %142 = vmatprep.subr.bf16.mxu0 0
    %143 = vmatpush1.bf16.msra.mxu0 0
    %144 = vmatprep.subr.bf16.mxu0 0
    %145 = vmatpush1.bf16.msra.mxu0 0
    %146 = vmatprep.subr.bf16.mxu0 0
    %147 = vmatpush1.bf16.msra.mxu0 0
    %148 = vmatprep.subr.bf16.mxu0 0
    %149 = vmatpush1.bf16.msra.mxu0 0
    %150 = vmatprep.subr.bf16.mxu0 0
    %151 = vmatpush1.bf16.msra.mxu0 0
    %152 = vmatprep.subr.bf16.mxu0 0
    %153 = vmatpush1.bf16.msra.mxu0 0
    %154 = vmatprep.subr.bf16.mxu0 0
    %155 = vmatpush1.bf16.msra.mxu0 0
    %156 = vmatprep.subr.bf16.mxu0 0
    %157 = vmatpush1.bf16.msra.mxu0 0
    %158 = vmatprep.subr.bf16.mxu0 0
    %159 = vmatpush1.bf16.msra.mxu0 0
    %160 = vmatprep.mubr.bf16.mxu0 0
    %161 = vmatmul.mubr.bf16.gmra.mrb[0].mxu0 %v38
    %v162 = vpop.f32.mrb[0].mxu0
    %v163 = vadd.f32 0.0, %v162
    %v164 = vpop.f32.mrb[0].mxu0
    %v165 = vpop.f32.mrb[0].mxu0
    %v166 = vpop.f32.mrb[0].mxu0
    %167 = vdwg.mxu0
    %v168 = vpack.c.bf16 %v163, %v163
    %v185 = vunpack.c.l.b16 %v100
    %v186 = vunpack.c.l.b16 %v101
    %v187 = vunpack.c.l.b16 %v102
    %v188 = vunpack.c.l.b16 %v103
    %v189 = vunpack.c.l.b16 %v104
    %v190 = vunpack.c.l.b16 %v105
    %v191 = vunpack.c.l.b16 %v106
    %v192 = vunpack.c.l.b16 %v107
    %v193 = vunpack.c.l.b16 %v108
    %v194 = vunpack.c.l.b16 %v109
    %v195 = vunpack.c.l.b16 %v110
    %v196 = vunpack.c.l.b16 %v111
    %v197 = vunpack.c.l.b16 %v112
    %v198 = vunpack.c.l.b16 %v113
    %v199 = vunpack.c.l.b16 %v114
    %v200 = vunpack.c.l.b16 %v115
    %v201 = vpack.c.b16 %v186, %v185
    %v202 = vpack.c.b16 %v188, %v187
    %v203 = vpack.c.b16 %v190, %v189
    %v204 = vpack.c.b16 %v192, %v191
    %v205 = vpack.c.b16 %v194, %v193
    %v206 = vpack.c.b16 %v196, %v195
    %v207 = vpack.c.b16 %v198, %v197
    %v208 = vpack.c.b16 %v200, %v199
    %217 = vmatprep.subr.bf16.mxu0 0
    %218 = vmatpush1.bf16.msra.mxu0 %v201
    %219 = vmatprep.subr.bf16.mxu0 0
    %220 = vmatpush1.bf16.msra.mxu0 %v202
    %221 = vmatprep.subr.bf16.mxu0 0
    %222 = vmatpush1.bf16.msra.mxu0 %v203
    %223 = vmatprep.subr.bf16.mxu0 0
    %224 = vmatpush1.bf16.msra.mxu0 %v204
    %225 = vmatprep.subr.bf16.mxu0 0
    %226 = vmatpush1.bf16.msra.mxu0 %v205
    %227 = vmatprep.subr.bf16.mxu0 0
    %228 = vmatpush1.bf16.msra.mxu0 %v206
    %229 = vmatprep.subr.bf16.mxu0 0
    %230 = vmatpush1.bf16.msra.mxu0 %v207
    %231 = vmatprep.subr.bf16.mxu0 0
    %232 = vmatpush1.bf16.msra.mxu0 %v208
    %233 = vmatprep.subr.bf16.mxu0 0
    %234 = vmatpush1.bf16.msra.mxu0 0
    %235 = vmatprep.subr.bf16.mxu0 0
    %236 = vmatpush1.bf16.msra.mxu0 0
    %237 = vmatprep.subr.bf16.mxu0 0
    %238 = vmatpush1.bf16.msra.mxu0 0
    %239 = vmatprep.subr.bf16.mxu0 0
    %240 = vmatpush1.bf16.msra.mxu0 0
    %241 = vmatprep.subr.bf16.mxu0 0
    %242 = vmatpush1.bf16.msra.mxu0 0
    %243 = vmatprep.subr.bf16.mxu0 0
    %244 = vmatpush1.bf16.msra.mxu0 0
    %245 = vmatprep.subr.bf16.mxu0 0
    %246 = vmatpush1.bf16.msra.mxu0 0
    %247 = vmatprep.subr.bf16.mxu0 0
    %248 = vmatpush1.bf16.msra.mxu0 0
    %249 = vmatprep.mubr.bf16.mxu0 0
    %250 = vmatmul.mubr.bf16.gmra.mrb[0].mxu0 %v168
    %v251 = vpop.f32.mrb[0].mxu0
    %v252 = vadd.f32 0.0, %v251
    %v253 = vpop.f32.mrb[0].mxu0
    %v254 = vpop.f32.mrb[0].mxu0
    %v255 = vpop.f32.mrb[0].mxu0
    %256 = vdwg.mxu0
    %v257 = vsel %vm94, %v252, -inf
    %258 = vmax.xlane.f32.xlu0 %v257
    %v259 = vpop.xlane.xlu0 %258
    %v260 = vsub.f32 %v252, %v259
    %v261 = vmul.f32 %v260, 1.442695
    %v262 = vpow.pop %v261
    %v263 = vsel %vm94, %v262, 0.0
    %264 = vadd.xlane.f32.xlu0 %v263
    %v265 = vpop.xlane.xlu0 %264
    %v266 = vlog2.pop %v265
    %v267 = vmul.f32 %v266, 0.6931472
    %v268 = vadd.f32 %v259, %v267
    %v269 = vsub.f32 %v252, %v268
    %271 = vset.pattern.permute.xlu0 5
    %272 = vperm.xlu0 %271, %v93
    %v273 = vpop.permute.xlu0 %272
    %v275 = vadd.f32 %v269, %v273
    %277 = vrot.lane.b32.xlu0 %v275, 5
    %v278 = vpop.permute.xlu0 %277
    %vm280 = vcmask 80936
    %281 = vst.msk [vmem:[#allocation2] sm:$0xff] %vm280, %v278
    %vm282 = vcmask 1047632
    %283 = vst.msk [vmem:[#allocation2] sm:$0xff] %vm282, -inf
    // Predicated region
    $region18: #{tpu_custom_call.1} parent=1 // pred_check
      _
    $region19: #{tpu_custom_call.1} parent=1 // pred_check_branch
      %285 = sbr.rel (0) target = $region21
    $region20: #{tpu_custom_call.1} parent=1 // pred_region
      %s287 = ssub.s32 128, 128
      %288 = vsyncadd [#allocation3], %s287
      %s290 = sshll.u32 [#allocation2], 4
      %s291 = int_to_ptr.vmem [resolvable:$true] %s290
      %293 = dma.vmem_to_hbm [thread:$0]  %s291, 128, %s4, [#allocation3]
    $region21: #{tpu_custom_call.1} parent=1 // pred_fallthru
      _
    // Predicated region
    $region22: #{tpu_custom_call.1} parent=1 // pred_check
      _
    $region23: #{tpu_custom_call.1} parent=1 // pred_check_branch
      %295 = sbr.rel (0) target = $region25
    $region24: #{tpu_custom_call.1} parent=1 // pred_region
      %296 = dma.done [#allocation3], 128
    $region25: #{tpu_custom_call.1} parent=1 // pred_fallthru
      _
    %297 = vsyncpa [#allocation3], 1

</llo_original>
